<compile_context>
chip_gen: v6e
topology: v6e:2x2x1
jax: 0.10.0
libtpu: 0.0.40
codegen_flags: <defaults>
</compile_context>

<pallas_src>
import jax
import jax.numpy as jnp
from jax.experimental import pallas as pl
from jax.experimental.pallas import tpu as pltpu

SUBLANE = 8  # f32 sublane width (batch tile granularity)


def _round_up(n, m):
    return ((n + m - 1) // m) * m


def _mlp_kernel(x_ref, w1_ref, b1_ref, w2_ref, b2_ref, o_ref):
    # First linear: (TB, in) @ (in, hid) on the MXU in bf16, f32 accumulation.
    x = x_ref[...].astype(jnp.bfloat16)
    h = jnp.dot(x, w1_ref[...], preferred_element_type=jnp.float32)
    h = h + b1_ref[...]                      # f32 bias add (VPU)
    h = h * jax.nn.sigmoid(h)                # Swish in f32; sigmoid -> EUP
    # Dropout: identity in eval mode.
    # Second linear: (TB, hid) @ (hid, out), bf16 operands, f32 accumulation.
    out = jnp.dot(h.astype(jnp.bfloat16), w2_ref[...],
                  preferred_element_type=jnp.float32)
    out = out + b2_ref[...]
    o_ref[...] = out.astype(o_ref.dtype)


def prepare_params(w1, b1, w2, b2):
    """One-time parameter prep (hoisted out of the per-call path).

    Casts the matmul operands to bf16 (MXU-native rate on v5e/v6e/v7x);
    biases stay f32 for the f32 bias-add / Swish path.
    """
    return (w1.astype(jnp.bfloat16), b1.astype(jnp.float32),
            w2.astype(jnp.bfloat16), b2.astype(jnp.float32))


def simple_classifier_forward(x, params, *, max_block_batch=1024):
    """x: (B, in_dim) f32; params = prepare_params(w1, b1, w2, b2)."""
    w1, b1, w2, b2 = params
    B, in_dim = x.shape
    hid_dim = w1.shape[1]
    out_dim = w2.shape[1]

    # Batch tiling: pad B only to a multiple of the sublane width, then pick the
    # number of grid steps so that (a) tiles stay <= max_block_batch rows and
    # (b) there are >= 2 steps whenever B > 8, so the "parallel" batch axis can
    # shard across v7x's two TensorCores.  Over-padding is bounded by n_steps*7.
    b_p8 = _round_up(B, SUBLANE)
    n_steps = pl.cdiv(b_p8, max_block_batch)
    if b_p8 > SUBLANE:
        n_steps = max(n_steps, 2)
    tb = _round_up(pl.cdiv(b_p8, n_steps), SUBLANE)
    b_p = n_steps * tb

    xp = x if b_p == B else jnp.pad(x, ((0, b_p - B), (0, 0)))

    out = pl.pallas_call(
        _mlp_kernel,
        out_shape=jax.ShapeDtypeStruct((b_p, out_dim), x.dtype),
        grid=(n_steps,),
        in_specs=[
            # x tiles march with the batch grid index; feature dim is full-extent
            # (in_dim), so no lane padding / extra HBM copy of x is needed.
            pl.BlockSpec((tb, in_dim), lambda i: (i, 0)),
            # Weights / biases: full-extent blocks, constant index_map ->
            # VMEM-resident across all grid steps.
            pl.BlockSpec((in_dim, hid_dim), lambda i: (0, 0)),
            pl.BlockSpec((1, hid_dim), lambda i: (0, 0)),
            pl.BlockSpec((hid_dim, out_dim), lambda i: (0, 0)),
            pl.BlockSpec((1, out_dim), lambda i: (0, 0)),
        ],
        # Narrow (full-extent) output block: HBM writes stay B*out_dim instead of
        # 8x-inflated 128-wide stores; this kernel is memory/overhead bound, not
        # store-slot bound.
        out_specs=pl.BlockSpec((tb, out_dim), lambda i: (i, 0)),
        compiler_params=pltpu.CompilerParams(
            dimension_semantics=("parallel",),
            vmem_limit_bytes=32 << 20,
        ),
    )(xp, w1, b1, w2, b2)

    return out if b_p == B else out[:B]


def make_weight_norm_params(key, fan_in, fan_out):
    """Deterministic init mimicking nn.Linear + weight_norm(dim=None)."""
    kv, kb, kg = jax.random.split(key, 3)
    bound = 1.0 / jnp.sqrt(fan_in)
    v = jax.random.uniform(kv, (fan_out, fan_in), jnp.float32, -bound, bound)
    b = jax.random.uniform(kb, (fan_out,), jnp.float32, -bound, bound)
    # weight_norm with dim=None: scalar g, Frobenius norm over the whole tensor.
    g = jax.random.uniform(kg, (), jnp.float32, 0.5, 1.5)
    w_eff = g * v / jnp.linalg.norm(v)           # (fan_out, fan_in), PyTorch layout
    return w_eff.T, b.reshape(1, fan_out)        # transpose for x @ W layout


def reference_forward(x, w1, b1, w2, b2):
    h = x @ w1 + b1
    h = h * jax.nn.sigmoid(h)
    return h @ w2 + b2


if __name__ == "__main__":
    batch, in_dim, hid_dim, out_dim = 8, 32, 64, 16

    key = jax.random.PRNGKey(0)
    kx, k1, k2 = jax.random.split(key, 3)

    x = jax.random.normal(kx, (batch, in_dim), jnp.float32)
    w1, b1 = make_weight_norm_params(k1, in_dim, hid_dim)
    w2, b2 = make_weight_norm_params(k2, hid_dim, out_dim)

    # Hoisted, one-time parameter prep (weight_norm fold + bf16 cast).
    params = prepare_params(w1, b1, w2, b2)

    logits = simple_classifier_forward(x, params)
    logits = jax.block_until_ready(logits)

    ref = reference_forward(x, w1, b1, w2, b2)
    assert logits.shape == (batch, out_dim)
    # bf16 MXU operands (f32 accumulation): loosened tolerance vs the f32 reference.
    assert jnp.allclose(logits, ref, atol=2e-2, rtol=2e-2), "mismatch vs reference"

    print("KERNEL_OK")
</pallas_src>

<mosaic_0001>
module attributes {stable_mosaic.version = 11 : i64} {
  func.func @_mlp_kernel(%arg0: i32, %arg1: memref<8x32xf32, #tpu.memory_space<vmem>>, %arg2: memref<32x64xbf16, #tpu.memory_space<vmem>>, %arg3: memref<1x64xf32, #tpu.memory_space<vmem>>, %arg4: memref<64x16xbf16, #tpu.memory_space<vmem>>, %arg5: memref<1x16xf32, #tpu.memory_space<vmem>>, %arg6: memref<8x16xf32, #tpu.memory_space<vmem>>) attributes {dimension_semantics = [#tpu.dimension_semantics<parallel>], iteration_bounds = array<i64: 1>, scalar_prefetch = 0 : i64, scratch_operands = 0 : i64, tpu.core_type = #tpu.core_type<tc>, window_params = [{transform_indices = @transform_0, window_bounds = array<i64: 8, 32>}, {pipeline_mode = #tpu.pipeline_mode<synchronous>, transform_indices = @transform_1, window_bounds = array<i64: 32, 64>}, {pipeline_mode = #tpu.pipeline_mode<synchronous>, transform_indices = @transform_2, window_bounds = array<i64: 1, 64>}, {pipeline_mode = #tpu.pipeline_mode<synchronous>, transform_indices = @transform_3, window_bounds = array<i64: 64, 16>}, {pipeline_mode = #tpu.pipeline_mode<synchronous>, transform_indices = @transform_4, window_bounds = array<i64: 1, 16>}, {transform_indices = @transform_5, window_bounds = array<i64: 8, 16>}]} {
    %c0 = arith.constant 0 : index
    %c0_0 = arith.constant 0 : index
    %0 = vector.load %arg1[%c0, %c0_0] : memref<8x32xf32, #tpu.memory_space<vmem>>, vector<8x32xf32>
    %1 = arith.truncf %0 : vector<8x32xf32> to vector<8x32xbf16>
    %c0_1 = arith.constant 0 : index
    %c0_2 = arith.constant 0 : index
    %2 = vector.load %arg2[%c0_1, %c0_2] : memref<32x64xbf16, #tpu.memory_space<vmem>>, vector<32x64xbf16>
    %cst = arith.constant dense<0.000000e+00> : vector<8x64xf32>
    %3 = tpu.matmul %1, %2, %cst {dimension_numbers = #tpu.dot_dimension_numbers<[1], [0], [0], [1], [0, 0, 1, 1], [], []>} : vector<8x32xbf16>, vector<32x64xbf16>, vector<8x64xf32> -> vector<8x64xf32>
    %c0_3 = arith.constant 0 : index
    %c0_4 = arith.constant 0 : index
    %4 = vector.load %arg3[%c0_3, %c0_4] : memref<1x64xf32, #tpu.memory_space<vmem>>, vector<1x64xf32>
    %5 = vector.broadcast %4 : vector<1x64xf32> to vector<8x64xf32>
    %6 = arith.addf %3, %5 : vector<8x64xf32>
    %7 = arith.negf %6 : vector<8x64xf32>
    %8 = math.exp %7 : vector<8x64xf32>
    %cst_5 = arith.constant 1.000000e+00 : f32
    %9 = vector.broadcast %cst_5 : f32 to vector<8x64xf32>
    %10 = arith.addf %9, %8 : vector<8x64xf32>
    %11 = arith.divf %9, %10 : vector<8x64xf32>
    %12 = arith.mulf %6, %11 : vector<8x64xf32>
    %13 = arith.truncf %12 : vector<8x64xf32> to vector<8x64xbf16>
    %c0_6 = arith.constant 0 : index
    %c0_7 = arith.constant 0 : index
    %14 = vector.load %arg4[%c0_6, %c0_7] : memref<64x16xbf16, #tpu.memory_space<vmem>>, vector<64x16xbf16>
    %cst_8 = arith.constant dense<0.000000e+00> : vector<8x16xf32>
    %15 = tpu.matmul %13, %14, %cst_8 {dimension_numbers = #tpu.dot_dimension_numbers<[1], [0], [0], [1], [0, 0, 1, 1], [], []>} : vector<8x64xbf16>, vector<64x16xbf16>, vector<8x16xf32> -> vector<8x16xf32>
    %c0_9 = arith.constant 0 : index
    %c0_10 = arith.constant 0 : index
    %16 = vector.load %arg5[%c0_9, %c0_10] : memref<1x16xf32, #tpu.memory_space<vmem>>, vector<1x16xf32>
    %17 = vector.broadcast %16 : vector<1x16xf32> to vector<8x16xf32>
    %18 = arith.addf %15, %17 : vector<8x16xf32>
    %c0_11 = arith.constant 0 : index
    %c0_12 = arith.constant 0 : index
    %19 = vector.load %arg6[%c0_11, %c0_12] : memref<8x16xf32, #tpu.memory_space<vmem>>, vector<8x16xf32>
    tpu.vector_store %arg6[%c0_11, %c0_12], %18 {strides = array<i32>} : memref<8x16xf32, #tpu.memory_space<vmem>>, vector<8x16xf32>,
    return
  }
  func.func @transform_0(%arg0: i32) -> (i32, i32) {
    %c0_i32 = arith.constant 0 : i32
    %c0_i32_0 = arith.constant 0 : i32
    return %arg0, %c0_i32 : i32, i32
  }
  func.func @transform_1(%arg0: i32) -> (i32, i32) {
    %c0_i32 = arith.constant 0 : i32
    %c0_i32_0 = arith.constant 0 : i32
    %c0_i32_1 = arith.constant 0 : i32
    return %c0_i32, %c0_i32_0 : i32, i32
  }
  func.func @transform_2(%arg0: i32) -> (i32, i32) {
    %c0_i32 = arith.constant 0 : i32
    %c0_i32_0 = arith.constant 0 : i32
    %c0_i32_1 = arith.constant 0 : i32
    return %c0_i32, %c0_i32_0 : i32, i32
  }
  func.func @transform_3(%arg0: i32) -> (i32, i32) {
    %c0_i32 = arith.constant 0 : i32
    %c0_i32_0 = arith.constant 0 : i32
    %c0_i32_1 = arith.constant 0 : i32
    return %c0_i32, %c0_i32_0 : i32, i32
  }
  func.func @transform_4(%arg0: i32) -> (i32, i32) {
    %c0_i32 = arith.constant 0 : i32
    %c0_i32_0 = arith.constant 0 : i32
    %c0_i32_1 = arith.constant 0 : i32
    return %c0_i32, %c0_i32_0 : i32, i32
  }
  func.func @transform_5(%arg0: i32) -> (i32, i32) {
    %c0_i32 = arith.constant 0 : i32
    %c0_i32_0 = arith.constant 0 : i32
    return %arg0, %c0_i32 : i32, i32
  }
}

</mosaic_0001>

<llo_original>
// kernel: tpu_custom_call.1
$region0: #{tpu_custom_call.1}
  #allocation0 [shape = 'u32[]', space=smem, size = 0x4, offset = 0x4, fixed_abs, tag = 'smem constant byte address 0x4 - core index']
  #allocation1 [shape = 'u32[144,128]{1,0:T(1,128)}', space=vmem, size = 0x12000, scoped, tag = 'internal scratch']
  %s0 = inlined_call_operand.vmem [shape: f32[8,32], index: 0, kind: input, shape index: {}]
  %s1 = inlined_call_operand.vmem [shape: bf16[32,64], index: 1, kind: input, shape index: {}]
  %s2 = inlined_call_operand.vmem [shape: f32[1,64], index: 2, kind: input, shape index: {}]
  %s3 = inlined_call_operand.vmem [shape: bf16[64,16], index: 3, kind: input, shape index: {}]
  %s4 = inlined_call_operand.vmem [shape: f32[1,16], index: 4, kind: input, shape index: {}]
  %s5 = inlined_call_operand.hbm [shape: f32[8,16], index: 5, kind: output, shape index: {}]
  %s6 = sld [smem:[#allocation0]]
  $region30: #{tpu_custom_call.1} parent=0
    _
  %s8 = ssub.s32 1, %s6
  %s9 = scalar_select 0, %s8, %s6
  $region1: #{tpu_custom_call.1} parent=0
    #allocation2 [shape = 'u8[4096]{0}', space=vmem, size = 0x1000, scoped, tag = 'output window, operand 0, single buffered']
    #allocation3 [shape = 's32[1]{0}', space=sflag, size = 0x4, scoped, tag = 'scoped memory for tpu_custom_call.1']
    %10 = vsyncpa [#allocation3], 0
    // Predicated region
    $region2: #{tpu_custom_call.1} parent=1 // pred_check
      _
    $region3: #{tpu_custom_call.1} parent=1 // pred_check_branch
      %12 = sbr.rel (0) target = $region5
    $region4: #{tpu_custom_call.1} parent=1 // pred_region
      _
    $region5: #{tpu_custom_call.1} parent=1 // pred_fallthru
      _
    // Predicated region
    $region6: #{tpu_custom_call.1} parent=1 // pred_check
      _
    $region7: #{tpu_custom_call.1} parent=1 // pred_check_branch
      %14 = sbr.rel (0) target = $region9
    $region8: #{tpu_custom_call.1} parent=1 // pred_region
      _
    $region9: #{tpu_custom_call.1} parent=1 // pred_fallthru
      _
    // Predicated region
    $region10: #{tpu_custom_call.1} parent=1 // pred_check
      _
    $region11: #{tpu_custom_call.1} parent=1 // pred_check_branch
      %16 = sbr.rel (0) target = $region13
    $region12: #{tpu_custom_call.1} parent=1 // pred_region
      _
    $region13: #{tpu_custom_call.1} parent=1 // pred_fallthru
      _
    // Predicated region
    $region14: #{tpu_custom_call.1} parent=1 // pred_check
      _
    $region15: #{tpu_custom_call.1} parent=1 // pred_check_branch
      %18 = sbr.rel (0) target = $region17
    $region16: #{tpu_custom_call.1} parent=1 // pred_region
      _
    $region17: #{tpu_custom_call.1} parent=1 // pred_fallthru
      _
    // Predicated region
    $region18: #{tpu_custom_call.1} parent=1 // pred_check
      _
    $region19: #{tpu_custom_call.1} parent=1 // pred_check_branch
      %20 = sbr.rel (0) target = $region21
    $region20: #{tpu_custom_call.1} parent=1 // pred_region
      _
    $region21: #{tpu_custom_call.1} parent=1 // pred_fallthru
      _
    %v22 = vld [vmem:[%s0] sm:$0xff]
    %v23 = vpack.c.bf16 %v22, %v22
    %v24 = vld [vmem:[%s1] sm:$0xf]
    %v25 = vld [vmem:[%s1 + $0x4] sm:$0xf]
    %v26 = vld [vmem:[%s1 + $0x8] sm:$0xf]
    %v27 = vld [vmem:[%s1 + $0xc] sm:$0xf]
    %v28 = vld [vmem:[%s2] sm:$0x1]
    %v30 = vlaneseq
    %v31 = vshrl.u32 %v30, 7
    %v32 = vsub.s32 0, %v31
    %v33 = vrot.slane %v28, %v32
    %v39 = vunpack.c.l.b16 %v24
    %v40 = vunpack.c.l.b16 %v25
    %v41 = vunpack.c.l.b16 %v26
    %v42 = vunpack.c.l.b16 %v27
    %v43 = vpack.c.b16 %v40, %v39
    %v44 = vpack.c.b16 %v42, %v41
    %vm47 = vcmask 261120
    %v49 = vsel %vm47, %v23, 0
    %51 = vmatprep.subr.bf16.mxu0 0
    %52 = vmatpush1.bf16.msra.mxu0 0
    %53 = vmatprep.subr.bf16.mxu0 0
    %54 = vmatpush1.bf16.msra.mxu0 0
    %55 = vmatprep.subr.bf16.mxu0 0
    %56 = vmatpush1.bf16.msra.mxu0 0
    %57 = vmatprep.subr.bf16.mxu0 0
    %58 = vmatpush1.bf16.msra.mxu0 0
    %59 = vmatprep.subr.bf16.mxu0 0
    %60 = vmatpush1.bf16.msra.mxu0 0
    %61 = vmatprep.subr.bf16.mxu0 0
    %62 = vmatpush1.bf16.msra.mxu0 0
    %63 = vmatprep.subr.bf16.mxu0 0
    %64 = vmatpush1.bf16.msra.mxu0 %v44
    %65 = vmatprep.subr.bf16.mxu0 0
    %66 = vmatpush1.bf16.msra.mxu0 %v43
    %67 = vmatprep.subr.bf16.mxu0 0
    %68 = vmatpush2.bf16.msra.mxu0 0
    %69 = vmatprep.subr.bf16.mxu0 0
    %70 = vmatpush2.bf16.msra.mxu0 0
    %71 = vmatprep.subr.bf16.mxu0 0
    %72 = vmatpush2.bf16.msra.mxu0 0
    %73 = vmatprep.subr.bf16.mxu0 0
    %74 = vmatpush2.bf16.msra.mxu0 0
    %75 = vmatprep.subr.bf16.mxu0 0
    %76 = vmatpush2.bf16.msra.mxu0 0
    %77 = vmatprep.subr.bf16.mxu0 0
    %78 = vmatpush2.bf16.msra.mxu0 0
    %79 = vmatprep.subr.bf16.mxu0 0
    %80 = vmatpush2.bf16.msra.mxu0 0
    %81 = vmatprep.subr.bf16.mxu0 0
    %82 = vmatpush2.bf16.msra.mxu0 0
    %83 = vmatprep.mubr.bf16.mxu0 0
    %84 = vmatmul.mubr.bf16.gmra.mxu0 %v49
    %v85 = vpop.f32.mrf.mxu0
    %v86 = vadd.f32 %v33, %v85
    %v87 = vpop.f32.mrf.mxu0
    %v88 = vpop.f32.mrf.mxu0
    %v89 = vpop.f32.mrf.mxu0
    %90 = vdwg.mxu0
    %v91 = vxor.u32 %v86, 2147483648
    %v92 = vmul.f32 %v91, 1.442695
    %v93 = vpow.pop %v92
    %v94 = vadd.f32 %v93, 1.0
    %v95 = vrcp.pop %v94
    %v96 = vmul.f32 1.0, %v95
    %v97 = vmul.f32 %v86, %v96
    %v98 = vpack.c.bf16 %v97, %v97
    %v99 = vld [vmem:[%s3] sm:$0xf]
    %v100 = vld [vmem:[%s3 + $0x4] sm:$0xf]
    %v101 = vld [vmem:[%s3 + $0x8] sm:$0xf]
    %v102 = vld [vmem:[%s3 + $0xc] sm:$0xf]
    %v103 = vld [vmem:[%s3 + $0x10] sm:$0xf]
    %v104 = vld [vmem:[%s3 + $0x14] sm:$0xf]
    %v105 = vld [vmem:[%s3 + $0x18] sm:$0xf]
    %v106 = vld [vmem:[%s3 + $0x1c] sm:$0xf]
    %v107 = vld [vmem:[%s4] sm:$0x1]
    %v109 = vlaneseq
    %v110 = vshrl.u32 %v109, 7
    %v111 = vsub.s32 0, %v110
    %v112 = vrot.slane %v107, %v111
    %v122 = vunpack.c.l.b16 %v99
    %v123 = vunpack.c.l.b16 %v100
    %v124 = vunpack.c.l.b16 %v101
    %v125 = vunpack.c.l.b16 %v102
    %v126 = vunpack.c.l.b16 %v103
    %v127 = vunpack.c.l.b16 %v104
    %v128 = vunpack.c.l.b16 %v105
    %v129 = vunpack.c.l.b16 %v106
    %v130 = vpack.c.b16 %v123, %v122
    %v131 = vpack.c.b16 %v125, %v124
    %v132 = vpack.c.b16 %v127, %v126
    %v133 = vpack.c.b16 %v129, %v128
    %vm138 = vcmask 523264
    %v140 = vsel %vm138, %v98, 0
    %142 = vmatprep.subr.bf16.mxu0 0
    %143 = vmatpush1.bf16.msra.mxu0 0
    %144 = vmatprep.subr.bf16.mxu0 0
    %145 = vmatpush1.bf16.msra.mxu0 0
    %146 = vmatprep.subr.bf16.mxu0 0
    %147 = vmatpush1.bf16.msra.mxu0 0
    %148 = vmatprep.subr.bf16.mxu0 0
    %149 = vmatpush1.bf16.msra.mxu0 0
    %150 = vmatprep.subr.bf16.mxu0 0
    %151 = vmatpush1.bf16.msra.mxu0 %v133
    %152 = vmatprep.subr.bf16.mxu0 0
    %153 = vmatpush1.bf16.msra.mxu0 %v132
    %154 = vmatprep.subr.bf16.mxu0 0
    %155 = vmatpush1.bf16.msra.mxu0 %v131
    %156 = vmatprep.subr.bf16.mxu0 0
    %157 = vmatpush1.bf16.msra.mxu0 %v130
    %158 = vmatprep.subr.bf16.mxu0 0
    %159 = vmatpush2.bf16.msra.mxu0 0
    %160 = vmatprep.subr.bf16.mxu0 0
    %161 = vmatpush2.bf16.msra.mxu0 0
    %162 = vmatprep.subr.bf16.mxu0 0
    %163 = vmatpush2.bf16.msra.mxu0 0
    %164 = vmatprep.subr.bf16.mxu0 0
    %165 = vmatpush2.bf16.msra.mxu0 0
    %166 = vmatprep.subr.bf16.mxu0 0
    %167 = vmatpush2.bf16.msra.mxu0 0
    %168 = vmatprep.subr.bf16.mxu0 0
    %169 = vmatpush2.bf16.msra.mxu0 0
    %170 = vmatprep.subr.bf16.mxu0 0
    %171 = vmatpush2.bf16.msra.mxu0 0
    %172 = vmatprep.subr.bf16.mxu0 0
    %173 = vmatpush2.bf16.msra.mxu0 0
    %174 = vmatprep.mubr.bf16.mxu0 0
    %175 = vmatmul.mubr.bf16.gmra.mxu0 %v140
    %v176 = vpop.f32.mrf.mxu0
    %v177 = vadd.f32 %v112, %v176
    %v178 = vpop.f32.mrf.mxu0
    %v179 = vpop.f32.mrf.mxu0
    %v180 = vpop.f32.mrf.mxu0
    %181 = vdwg.mxu0
    %vm182 = vcmask 130048
    %183 = vst.msk [vmem:[#allocation2] sm:$0xff] %vm182, %v177
    // Predicated region
    $region22: #{tpu_custom_call.1} parent=1 // pred_check
      _
    $region23: #{tpu_custom_call.1} parent=1 // pred_check_branch
      %185 = sbr.rel (0) target = $region25
    $region24: #{tpu_custom_call.1} parent=1 // pred_region
      %s187 = ssub.s32 128, 128
      %188 = vsyncadd [#allocation3], %s187
      %s190 = sshll.u32 [#allocation2], 4
      %s191 = int_to_ptr.vmem [resolvable:$true] %s190
      %193 = dma.vmem_to_hbm [thread:$0]  %s191, 128, %s5, [#allocation3]
    $region25: #{tpu_custom_call.1} parent=1 // pred_fallthru
      _
    // Predicated region
    $region26: #{tpu_custom_call.1} parent=1 // pred_check
      _
    $region27: #{tpu_custom_call.1} parent=1 // pred_check_branch
      %195 = sbr.rel (0) target = $region29
    $region28: #{tpu_custom_call.1} parent=1 // pred_region
      %196 = dma.done [#allocation3], 128
    $region29: #{tpu_custom_call.1} parent=1 // pred_fallthru
      _
    %197 = vsyncpa [#allocation3], 1

</llo_original>
